<compile_context>
chip_gen: v7x
topology: tpu7x:2x2x1
jax: 0.10.0
libtpu: 0.0.40
codegen_flags: <defaults>
</compile_context>

<pallas_src>
import functools

import jax
import jax.numpy as jnp
from jax import lax
from jax.experimental import pallas as pl
from jax.experimental.pallas import tpu as pltpu

EPS = 1e-10

# conv / feature-extractor hyper-parameters (synthetic "model")
K = 7           # kernel size
STRIDE = 2
PAD = 3
CIN = 3         # forced 3-channel slices, as in the PyTorch forward
F_OUT = 32      # feature channels produced by the synthetic backbone
P_RAW = CIN * K * K            # 147 patch features (streamed UNPADDED)

# block-sizing knobs
MAX_PIX_TILE = 4096            # pixel-tile cap -> VMEM stays v7x-safe
TARGET_BLOCK_BYTES = 2 << 20   # ~2 MiB of activations per input per grid step
MAX_CPB = 8                    # cap on statically-unrolled chunks per block


def _round_up(x, m):
    return -(-x // m) * m


def _perceptual_kernel(w_ref, a_in_ref, a_tg_ref, out_ref, *, cpb):
    """One grid block: for each of `cpb` chunks, one MXU matmul per tensor
    (feats^T = W @ patch^T), ReLU, channel-wise L2 normalisation (EUP rsqrt),
    squared diff and a fused full reduction into a per-block partial sum."""
    w = w_ref[...]                                   # (F_OUT, P_RAW) bf16
    total = jnp.zeros((1, 1), jnp.float32)
    for ci in range(cpb):                            # static unroll, cpb <= 8
        f_in = jnp.maximum(
            jnp.dot(w, a_in_ref[ci], preferred_element_type=jnp.float32), 0.0)
        f_tg = jnp.maximum(
            jnp.dot(w, a_tg_ref[ci], preferred_element_type=jnp.float32), 0.0)
        # normalize_tensor: x / (sqrt(sum_c x^2) + eps) ~= x * rsqrt(sum + eps^2)
        # single EUP op; finite (1e10) on all-zero columns so 0 * inv = 0.
        n_in = f_in * lax.rsqrt(
            jnp.sum(f_in * f_in, axis=0, keepdims=True) + EPS * EPS)
        n_tg = f_tg * lax.rsqrt(
            jnp.sum(f_tg * f_tg, axis=0, keepdims=True) + EPS * EPS)
        d = (n_in - n_tg) ** 2
        total = total + jnp.sum(d, keepdims=True)    # (1, 1) partial
    out_ref[...] = total.reshape(1, 1, 1)


def _perceptual_call(w_packed, a_in, a_tg, *, cpb, pix_tile, n_cblocks, n_ptiles):
    """Single pallas_call over (chunk-blocks, pixel-tiles); partial sums out."""
    f_out, p_raw = w_packed.shape
    kern = functools.partial(_perceptual_kernel, cpb=cpb)
    return pl.pallas_call(
        kern,
        out_shape=jax.ShapeDtypeStruct((n_cblocks * n_ptiles, 1, 1), jnp.float32),
        grid=(n_cblocks, n_ptiles),
        in_specs=[
            # constant block index -> weight stays resident, no per-step re-DMA
            pl.BlockSpec((f_out, p_raw), lambda b, p: (0, 0)),
            pl.BlockSpec((cpb, p_raw, pix_tile), lambda b, p: (b, 0, p)),
            pl.BlockSpec((cpb, p_raw, pix_tile), lambda b, p: (b, 0, p)),
        ],
        out_specs=pl.BlockSpec((1, 1, 1), lambda b, p: (b * n_ptiles + p, 0, 0)),
        compiler_params=pltpu.CompilerParams(
            dimension_semantics=("parallel", "parallel"),   # independent blocks
            vmem_limit_bytes=64 * 1024 * 1024),             # > v5e 16 MiB default
    )(w_packed, a_in, a_tg)


def _extract_patches(x):
    """x: (B, 3, H, W) bf16 -> (B, P_RAW, Ho*Wo) patch matrix, feature axis
    ordered (c, kh, kw) to match w_conv.reshape(F_OUT, P_RAW).  One fused XLA
    conv pass; no python-loop im2col, no transpose, no zero pad to 256."""
    b, c, h, w = x.shape
    ho = (h + 2 * PAD - K) // STRIDE + 1
    wo = (w + 2 * PAD - K) // STRIDE + 1
    p = lax.conv_general_dilated_patches(
        x, filter_shape=(K, K), window_strides=(STRIDE, STRIDE),
        padding=((PAD, PAD), (PAD, PAD)),
        dimension_numbers=("NCHW", "OIHW", "NCHW"))   # (B, C*K*K, Ho, Wo)
    return p.reshape(b, c * K * K, ho * wo), ho, wo


@jax.jit
def rad_perceptual_similarity(inp, tgt, w_conv):
    """Mirrors RadImageNetPerceptualSimilarity.forward.

    inp, tgt: (1, 1, D, H, W) float32 in [0, 1] (PyTorch layout, B=C=1).
    w_conv:   (F_OUT, 3, 7, 7) synthetic backbone conv weight.
    Returns (1, 1, 1, 1) float32 = sum over 3-slice depth chunks of
    spatial_average(sum_c (norm(feats_in) - norm(feats_tg))^2).
    """
    depth = inp.shape[2]
    # Same chunking as the reference: range(0, D-2, 3); trailing slices of a
    # non-multiple-of-3 depth are dropped, exactly like the PyTorch module.
    starts = list(range(0, depth - 2, 3))
    n_chunks = len(starts)
    if n_chunks == 0:
        return jnp.zeros((1, 1, 1, 1), jnp.float32)

    # gather all 3-slice chunks (mirrors input[:, :, k:k+3].squeeze()[None])
    in_chunks = jnp.stack([inp[0, 0, k:k + 3] for k in starts])   # (nc, 3, H, W)
    tg_chunks = jnp.stack([tgt[0, 0, k:k + 3] for k in starts])
    all_imgs = jnp.concatenate([in_chunks, tg_chunks], axis=0).astype(jnp.bfloat16)

    patches, ho, wo = _extract_patches(all_imgs)       # (2*nc, 147, hw) bf16
    hw = ho * wo
    a_in, a_tg = patches[:n_chunks], patches[n_chunks:]

    # ---------------- block sizing ----------------
    # pixel tiling for large images (keeps blocks inside v7x's 64 MiB VMEM)
    n_ptiles = max(1, -(-hw // MAX_PIX_TILE))
    pix_tile = hw if n_ptiles == 1 else _round_up(-(-hw // n_ptiles), 128)

    # pack several chunks per block when HW is small, so each grid step DMAs
    # ~1-2 MiB of activations instead of a tiny tile
    cpb = 1
    if n_ptiles == 1:
        cpb = max(1, min(n_chunks, MAX_CPB,
                         TARGET_BLOCK_BYTES // (P_RAW * hw * 2)))
    n_cblocks = -(-n_chunks // cpb)

    # v7x megacore: keep >= 2 independent grid blocks whenever possible
    if n_cblocks * n_ptiles < 2:
        if n_chunks >= 2:
            cpb = -(-n_chunks // 2)
            n_cblocks = -(-n_chunks // cpb)
        elif hw >= 256:
            n_ptiles = 2
            pix_tile = _round_up(-(-hw // 2), 128)

    hw_pad = n_ptiles * pix_tile
    nc_pad = n_cblocks * cpb

    # zero-padded pixels / chunks contribute exactly 0 to the result
    if hw_pad > hw:
        pad = ((0, 0), (0, 0), (0, hw_pad - hw))
        a_in = jnp.pad(a_in, pad)
        a_tg = jnp.pad(a_tg, pad)
    if nc_pad > n_chunks:
        pad = ((0, nc_pad - n_chunks), (0, 0), (0, 0))
        a_in = jnp.pad(a_in, pad)
        a_tg = jnp.pad(a_tg, pad)

    # pack conv weight as (F_OUT, 147) bf16 (no lane padding needed: F is the
    # M dim of the matmul, K=147 is padded internally by the MXU)
    w_packed = w_conv.reshape(F_OUT, P_RAW).astype(jnp.bfloat16)

    partials = _perceptual_call(w_packed, a_in, a_tg, cpb=cpb, pix_tile=pix_tile,
                                n_cblocks=n_cblocks, n_ptiles=n_ptiles)
    # fused channel-sum + spatial mean: all chunks share the same HW
    return (jnp.sum(partials) * (1.0 / float(hw))).reshape(1, 1, 1, 1)


if __name__ == "__main__":
    key = jax.random.PRNGKey(0)
    k_in, k_tg, k_w = jax.random.split(key, 3)

    # 5-D volumes (B=1, C=1, D=6, H=16, W=16): two depth chunks of 3 slices.
    x = jax.random.uniform(k_in, (1, 1, 6, 16, 16), dtype=jnp.float32)
    y = jax.random.uniform(k_tg, (1, 1, 6, 16, 16), dtype=jnp.float32)

    # Deterministic synthetic backbone weights: (F_OUT, CIN, K, K).
    w_conv = 0.05 * jax.random.normal(k_w, (F_OUT, CIN, K, K), dtype=jnp.float32)

    out = rad_perceptual_similarity(x, y, w_conv)
    out = jax.block_until_ready(out)
    assert out.shape == (1, 1, 1, 1) and out.dtype == jnp.float32
    print("KERNEL_OK")
</pallas_src>

<mosaic_0001>
module attributes {stable_mosaic.version = 11 : i64} {
  func.func @_perceptual_kernel(%arg0: i32, %arg1: i32, %arg2: memref<32x147xbf16, #tpu.memory_space<vmem>>, %arg3: memref<1x147x64xbf16, #tpu.memory_space<vmem>>, %arg4: memref<1x147x64xbf16, #tpu.memory_space<vmem>>, %arg5: memref<1x1x1xf32, #tpu.memory_space<vmem>>) attributes {dimension_semantics = [#tpu.dimension_semantics<parallel>, #tpu.dimension_semantics<parallel>], iteration_bounds = array<i64: 2, 1>, scalar_prefetch = 0 : i64, scratch_operands = 0 : i64, tpu.core_type = #tpu.core_type<tc>, window_params = [{pipeline_mode = #tpu.pipeline_mode<synchronous>, transform_indices = @transform_0, window_bounds = array<i64: 32, 147>}, {transform_indices = @transform_1, window_bounds = array<i64: 1, 147, 64>}, {transform_indices = @transform_2, window_bounds = array<i64: 1, 147, 64>}, {transform_indices = @transform_3, window_bounds = array<i64: 1, 1, 1>}]} {
    %c0 = arith.constant 0 : index
    %c0_0 = arith.constant 0 : index
    %0 = vector.load %arg2[%c0, %c0_0] : memref<32x147xbf16, #tpu.memory_space<vmem>>, vector<32x147xbf16>
    %cst = arith.constant 0.000000e+00 : f32
    %1 = vector.broadcast %cst : f32 to vector<1x1xf32>
    %c0_1 = arith.constant 0 : index
    %c0_2 = arith.constant 0 : index
    %c0_3 = arith.constant 0 : index
    %2 = vector.load %arg3[%c0_1, %c0_2, %c0_3] : memref<1x147x64xbf16, #tpu.memory_space<vmem>>, vector<1x147x64xbf16>
    %3 = vector.shape_cast %2 : vector<1x147x64xbf16> to vector<147x64xbf16>
    %cst_4 = arith.constant dense<0.000000e+00> : vector<32x64xf32>
    %4 = tpu.matmul %0, %3, %cst_4 {dimension_numbers = #tpu.dot_dimension_numbers<[1], [0], [0], [1], [0, 0, 1, 1], [], []>} : vector<32x147xbf16>, vector<147x64xbf16>, vector<32x64xf32> -> vector<32x64xf32>
    %cst_5 = arith.constant 0.000000e+00 : f32
    %5 = vector.broadcast %cst_5 : f32 to vector<32x64xf32>
    %6 = arith.maximumf %4, %5 : vector<32x64xf32>
    %c0_6 = arith.constant 0 : index
    %c0_7 = arith.constant 0 : index
    %c0_8 = arith.constant 0 : index
    %7 = vector.load %arg4[%c0_6, %c0_7, %c0_8] : memref<1x147x64xbf16, #tpu.memory_space<vmem>>, vector<1x147x64xbf16>
    %8 = vector.shape_cast %7 : vector<1x147x64xbf16> to vector<147x64xbf16>
    %cst_9 = arith.constant dense<0.000000e+00> : vector<32x64xf32>
    %9 = tpu.matmul %0, %8, %cst_9 {dimension_numbers = #tpu.dot_dimension_numbers<[1], [0], [0], [1], [0, 0, 1, 1], [], []>} : vector<32x147xbf16>, vector<147x64xbf16>, vector<32x64xf32> -> vector<32x64xf32>
    %cst_10 = arith.constant 0.000000e+00 : f32
    %10 = vector.broadcast %cst_10 : f32 to vector<32x64xf32>
    %11 = arith.maximumf %9, %10 : vector<32x64xf32>
    %12 = arith.mulf %6, %6 : vector<32x64xf32>
    %cst_11 = arith.constant dense<0.000000e+00> : vector<64xf32>
    %13 = vector.multi_reduction <add>, %12, %cst_11 [0] : vector<32x64xf32> to vector<64xf32>
    %14 = vector.shape_cast %13 : vector<64xf32> to vector<1x64xf32>
    %cst_12 = arith.constant 9.99999968E-21 : f32
    %15 = vector.broadcast %cst_12 : f32 to vector<1x64xf32>
    %16 = arith.addf %14, %15 : vector<1x64xf32>
    %17 = math.rsqrt %16 : vector<1x64xf32>
    %18 = vector.broadcast %17 : vector<1x64xf32> to vector<32x64xf32>
    %19 = arith.mulf %6, %18 : vector<32x64xf32>
    %20 = arith.mulf %11, %11 : vector<32x64xf32>
    %cst_13 = arith.constant dense<0.000000e+00> : vector<64xf32>
    %21 = vector.multi_reduction <add>, %20, %cst_13 [0] : vector<32x64xf32> to vector<64xf32>
    %22 = vector.shape_cast %21 : vector<64xf32> to vector<1x64xf32>
    %cst_14 = arith.constant 9.99999968E-21 : f32
    %23 = vector.broadcast %cst_14 : f32 to vector<1x64xf32>
    %24 = arith.addf %22, %23 : vector<1x64xf32>
    %25 = math.rsqrt %24 : vector<1x64xf32>
    %26 = vector.broadcast %25 : vector<1x64xf32> to vector<32x64xf32>
    %27 = arith.mulf %11, %26 : vector<32x64xf32>
    %28 = arith.subf %19, %27 : vector<32x64xf32>
    %29 = arith.mulf %28, %28 : vector<32x64xf32>
    %30 = vector.shape_cast %29 : vector<32x64xf32> to vector<1x32x64xf32>
    %cst_15 = arith.constant dense<0.000000e+00> : vector<1xf32>
    %31 = vector.multi_reduction <add>, %30, %cst_15 [1, 2] : vector<1x32x64xf32> to vector<1xf32>
    %32 = vector.shape_cast %31 : vector<1xf32> to vector<1x1x1xf32>
    %33 = vector.extract %32[0, 0, 0] : f32 from vector<1x1x1xf32>
    %34 = vector.broadcast %33 : f32 to vector<1x1xf32>
    %35 = arith.addf %1, %34 : vector<1x1xf32>
    %36 = vector.shape_cast %35 : vector<1x1xf32> to vector<1x1x1xf32>
    %c0_16 = arith.constant 0 : index
    %c0_17 = arith.constant 0 : index
    %c0_18 = arith.constant 0 : index
    %37 = vector.load %arg5[%c0_16, %c0_17, %c0_18] : memref<1x1x1xf32, #tpu.memory_space<vmem>>, vector<1x1x1xf32>
    tpu.vector_store %arg5[%c0_16, %c0_17, %c0_18], %36 {strides = array<i32>} : memref<1x1x1xf32, #tpu.memory_space<vmem>>, vector<1x1x1xf32>,
    return
  }
  func.func @transform_0(%arg0: i32, %arg1: i32) -> (i32, i32) {
    %c0_i32 = arith.constant 0 : i32
    %c0_i32_0 = arith.constant 0 : i32
    %c0_i32_1 = arith.constant 0 : i32
    return %c0_i32, %c0_i32_0 : i32, i32
  }
  func.func @transform_1(%arg0: i32, %arg1: i32) -> (i32, i32, i32) {
    %c0_i32 = arith.constant 0 : i32
    %c0_i32_0 = arith.constant 0 : i32
    return %arg0, %c0_i32, %arg1 : i32, i32, i32
  }
  func.func @transform_2(%arg0: i32, %arg1: i32) -> (i32, i32, i32) {
    %c0_i32 = arith.constant 0 : i32
    %c0_i32_0 = arith.constant 0 : i32
    return %arg0, %c0_i32, %arg1 : i32, i32, i32
  }
  func.func @transform_3(%arg0: i32, %arg1: i32) -> (i32, i32, i32) {
    %c1_i32 = arith.constant 1 : i32
    %0 = arith.muli %arg0, %c1_i32 : i32
    %1 = arith.addi %0, %arg1 : i32
    %c0_i32 = arith.constant 0 : i32
    %c0_i32_0 = arith.constant 0 : i32
    %c0_i32_1 = arith.constant 0 : i32
    return %1, %c0_i32, %c0_i32_0 : i32, i32, i32
  }
}

</mosaic_0001>

<llo_original>
// kernel: rad_perceptual_similarity.1
$region0: #{rad_perceptual_similarity.1}
  #allocation0 [shape = 'u32[]', space=smem, size = 0x4, offset = 0x4, fixed_abs, tag = 'smem constant byte address 0x4 - core index']
  #allocation1 [shape = 'u32[144,128]{1,0:T(1,128)}', space=vmem, size = 0x12000, scoped, tag = 'internal scratch']
  %s0 = inlined_call_operand.hbm [shape: bf16[32,147], index: 0, kind: input, shape index: {}]
  %s1 = inlined_call_operand.hbm [shape: bf16[2,147,64], index: 1, kind: input, shape index: {}]
  %s2 = inlined_call_operand.hbm [shape: bf16[2,147,64], index: 2, kind: input, shape index: {}]
  %s3 = inlined_call_operand.hbm [shape: f32[2,1,1], index: 3, kind: output, shape index: {}]
  %s4 = sld [smem:[#allocation0]]
  $region57: #{rad_perceptual_similarity.1} parent=0
    _
  %s6 = ssub.s32 1, %s4
  %s7 = scalar_select 0, %s6, %s4
  $region1: #{rad_perceptual_similarity.1} parent=0
    #allocation2 [shape = 'u8[16384]{0}', space=vmem, size = 0x4000, scoped, tag = 'input window, operand 0, single buffered']
    #allocation3 [shape = 's32[2]{0}', space=sflag, size = 0x8, scoped, tag = 'scoped memory for rad_perceptual_similarity.1']
    #allocation4 [shape = 's32[2]{0}', space=sflag, size = 0x8, scoped, tag = 'scoped memory for rad_perceptual_similarity.1']
    #allocation5 [shape = 'u8[77824]{0}', space=vmem, size = 0x13000, scoped, tag = 'input window, operand 1']
    #allocation6 [shape = 's32[2]{0}', space=sflag, size = 0x8, scoped, tag = 'scoped memory for rad_perceptual_similarity.1']
    #allocation7 [shape = 'u8[77824]{0}', space=vmem, size = 0x13000, scoped, tag = 'input window, operand 2']
    #allocation8 [shape = 'u8[1024]{0}', space=vmem, size = 0x400, scoped, tag = 'output window, operand 0']
    %8 = vsyncpa [#allocation3], 0
    %9 = vsyncpa [#allocation6], 0
    %s10 = scalar_lea.sflag [#allocation6], 1
    %11 = vsyncpa %s10, 0
    %12 = vsyncpa [#allocation4], 0
    %s13 = scalar_lea.sflag [#allocation4], 1
    %14 = vsyncpa %s13, 0
    loop: start=0, step=1, limit=4
    $region2: #{rad_perceptual_similarity.1} parent=1 // loop_pre_header
      _
    $region3: #{rad_perceptual_similarity.1} parent=1 // loop_header
      %s16 = sphi 0, %s20
      %p17 = scmp.ge.s32.totalorder %s16, 4
      %s23 = sphi 0, %s35
      %s24 = sphi 0, %s31
      %s25 = sphi 0, %s23
      %s26 = sphi 0, %s24
      %s27 = sphi 0, %s25
      %s28 = sphi 0, %s26
      %s36 = sphi 0, %s36
      %s38 = sphi 0, %s36
      %s39 = sphi 0, %s38
      %s53 = sphi 0, %s39
      %s61 = sphi 0, %s63
      %s64 = sphi 0, %s61
      %s65 = sphi 0, %s64
      %s81 = sphi 0, %s65
      %s89 = sphi 0, %s91
      %s92 = sphi 0, %s89
      %s93 = sphi 0, %s92
      %s109 = sphi 0, %s93
      %s117 = sphi 0, %s119
      %s120 = sphi 0, %s117
      %s121 = sphi 0, %s120
      %s137 = sphi 0, %s121
    $region4: #{rad_perceptual_similarity.1} parent=1 // loop_header_branch
      %19 = sbr.rel (%p17) target = $region8
    $region5: #{rad_perceptual_similarity.1} parent=1 // loop_body
      %s21 = ssub.s32 %s16, 1
      %s22 = ssub.s32 %s16, 2
      %s29 = sadd.s32 1, %s24
      %p30 = scmp.ge.s32.totalorder %s29, 1
      %s31 = scalar_select %p30, 0, %s29
      %s32 = sadd.s32 1, %s23
      %s33 = scalar_select %p30, %s32, %s23
      %p34 = scmp.ge.s32.totalorder %s33, 2
      %s35 = scalar_select %p34, 0, %s33
      %s37 = sadd.s32 %s36, 1
      %p40 = scmp.eq.s32.totalorder %s16, 1
      %p41 = scmp.ne.s32.totalorder %s36, %s38
      %p42 = scmp.eq.s32.totalorder %s16, 0
      %p43 = por %p41, %p42
      %p44 = scmp.ne.s32.totalorder %s36, %s38
      %p45 = scmp.eq.s32.totalorder %s21, 1
      %p46 = por %p44, %p45
      %p47 = scmp.ne.s32.totalorder %s38, %s39
      %p48 = scmp.eq.s32.totalorder %s21, 0
      %p49 = por %p47, %p48
      %p50 = scmp.ne.s32.totalorder %s38, %s39
      %p51 = scmp.eq.s32.totalorder %s22, 1
      %p52 = por %p50, %p51
      %p54 = scmp.ne.s32.totalorder %s39, %s53
      %p55 = scmp.eq.s32.totalorder %s22, 0
      %p56 = por %p54, %p55
      %s57 = ssub.s32 %s23, %s35
      %s58 = ssub.s32 %s24, %s31
      %s59 = sor.u32 %s57, %s58
      %p60 = scmp.eq.s32.totalorder %s59, 0
      %s62 = sadd.s32 %s61, 1
      %s63 = scalar_select %p60, %s61, %s62
      %p66 = pneg %p60
      %p67 = scmp.eq.s32.totalorder %s16, 1
      %p68 = por %p66, %p67
      %p69 = scmp.ne.s32.totalorder %s61, %s64
      %p70 = scmp.eq.s32.totalorder %s16, 0
      %p71 = por %p69, %p70
      %p72 = scmp.ne.s32.totalorder %s61, %s64
      %p73 = scmp.eq.s32.totalorder %s21, 1
      %p74 = por %p72, %p73
      %p75 = scmp.ne.s32.totalorder %s64, %s65
      %p76 = scmp.eq.s32.totalorder %s21, 0
      %p77 = por %p75, %p76
      %p78 = scmp.ne.s32.totalorder %s64, %s65
      %p79 = scmp.eq.s32.totalorder %s22, 1
      %p80 = por %p78, %p79
      %p82 = scmp.ne.s32.totalorder %s65, %s81
      %p83 = scmp.eq.s32.totalorder %s22, 0
      %p84 = por %p82, %p83
      %s85 = ssub.s32 %s23, %s35
      %s86 = ssub.s32 %s24, %s31
      %s87 = sor.u32 %s85, %s86
      %p88 = scmp.eq.s32.totalorder %s87, 0
      %s90 = sadd.s32 %s89, 1
      %s91 = scalar_select %p88, %s89, %s90
      %p94 = pneg %p88
      %p95 = scmp.eq.s32.totalorder %s16, 1
      %p96 = por %p94, %p95
      %p97 = scmp.ne.s32.totalorder %s89, %s92
      %p98 = scmp.eq.s32.totalorder %s16, 0
      %p99 = por %p97, %p98
      %p100 = scmp.ne.s32.totalorder %s89, %s92
      %p101 = scmp.eq.s32.totalorder %s21, 1
      %p102 = por %p100, %p101
      %p103 = scmp.ne.s32.totalorder %s92, %s93
      %p104 = scmp.eq.s32.totalorder %s21, 0
      %p105 = por %p103, %p104
      %p106 = scmp.ne.s32.totalorder %s92, %s93
      %p107 = scmp.eq.s32.totalorder %s22, 1
      %p108 = por %p106, %p107
      %p110 = scmp.ne.s32.totalorder %s93, %s109
      %p111 = scmp.eq.s32.totalorder %s22, 0
      %p112 = por %p110, %p111
      %s113 = sadd.s32 %s23, %s24
      %s114 = sadd.s32 %s35, %s31
      %s115 = ssub.s32 %s113, %s114
      %p116 = scmp.eq.s32.totalorder %s115, 0
      %s118 = sadd.s32 %s117, 1
      %s119 = scalar_select %p116, %s117, %s118
      %p122 = pneg %p116
      %p123 = scmp.eq.s32.totalorder %s16, 1
      %p124 = por %p122, %p123
      %p125 = scmp.ne.s32.totalorder %s117, %s120
      %p126 = scmp.eq.s32.totalorder %s16, 0
      %p127 = por %p125, %p126
      %p128 = scmp.ne.s32.totalorder %s117, %s120
      %p129 = scmp.eq.s32.totalorder %s21, 1
      %p130 = por %p128, %p129
      %p131 = scmp.ne.s32.totalorder %s120, %s121
      %p132 = scmp.eq.s32.totalorder %s21, 0
      %p133 = por %p131, %p132
      %p134 = scmp.ne.s32.totalorder %s120, %s121
      %p135 = scmp.eq.s32.totalorder %s22, 1
      %p136 = por %p134, %p135
      %p138 = scmp.ne.s32.totalorder %s121, %s137
      %p139 = scmp.eq.s32.totalorder %s22, 0
      %p140 = por %p138, %p139
      %p141 = scmp.le.s32.totalorder 1, %s16
      %p142 = scmp.lt.s32.totalorder %s16, 3
      %p143 = pnand %p141, %p142
      %p144 = pneg %p143
      // Predicated region
      $region9: #{rad_perceptual_similarity.1} parent=5 // pred_check
        _
      $region10: #{rad_perceptual_similarity.1} parent=5 // pred_check_branch
        %146 = sbr.rel (%p143) target = $region12
      $region11: #{rad_perceptual_similarity.1} parent=5 // pred_region
        %s147 = ssub.s32 %s16, 1
        // Predicated region
        $region13: #{rad_perceptual_similarity.1} parent=11 // pred_check
          %p148 = pneg %p49
        $region14: #{rad_perceptual_similarity.1} parent=11 // pred_check_branch
          %150 = sbr.rel (%p148) target = $region16
        $region15: #{rad_perceptual_similarity.1} parent=11 // pred_region
          %s152 = ssub.s32 512, 512
          %153 = vsyncadd [#allocation3], %s152
          %s154 = sshll.u32 [#allocation2], 4
          %s155 = int_to_ptr.vmem [resolvable:$true] %s154
          %160 = dma.hbm_to_vmem [thread:$0]  %s0, 512, %s155, [#allocation3], 128, 128, 8
        $region16: #{rad_perceptual_similarity.1} parent=11 // pred_fallthru
          _
      $region12: #{rad_perceptual_similarity.1} parent=5 // pred_fallthru
        _
      %p161 = scmp.lt.s32.totalorder %s16, 2
      // Predicated region
      $region17: #{rad_perceptual_similarity.1} parent=5 // pred_check
        %p162 = pneg %p161
      $region18: #{rad_perceptual_similarity.1} parent=5 // pred_check_branch
        %164 = sbr.rel (%p162) target = $region20
      $region19: #{rad_perceptual_similarity.1} parent=5 // pred_region
        // Predicated region
        $region21: #{rad_perceptual_similarity.1} parent=19 // pred_check
          %p165 = pneg %p71
        $region22: #{rad_perceptual_similarity.1} parent=19 // pred_check_branch
          %167 = sbr.rel (%p165) target = $region24
        $region23: #{rad_perceptual_similarity.1} parent=19 // pred_region
          %s168 = sand.u32 %s16, 1
          %s169 = scalar_lea.sflag [#allocation6], %s168
          %s170 = sand.u32 %s61, 1
          %s171 = smul.addr %s170, 76
          %s172 = scalar_lea.vmem [#allocation5], %s171
          %s174 = ssub.s32 1216, 1216
          %175 = vsyncadd %s169, %s174
          %s176 = smul.addr %s23, 19
          %s177 = sadd.s32 %s24, %s176
          %s178 = smul.addr %s177, 64
          %s179 = scalar_lea.hbm %s1, %s178
          %s180 = sshll.u32 %s172, 4
          %s181 = int_to_ptr.vmem [resolvable:$true] %s180
          %186 = dma.hbm_to_vmem [thread:$0]  %s179, 1216, %s181, %s169, 64, 64, 4
        $region24: #{rad_perceptual_similarity.1} parent=19 // pred_fallthru
          _
        // Predicated region
        $region25: #{rad_perceptual_similarity.1} parent=19 // pred_check
          %p187 = pneg %p99
        $region26: #{rad_perceptual_similarity.1} parent=19 // pred_check_branch
          %189 = sbr.rel (%p187) target = $region28
        $region27: #{rad_perceptual_similarity.1} parent=19 // pred_region
          %s190 = sand.u32 %s16, 1
          %s191 = scalar_lea.sflag [#allocation6], %s190
          %s192 = sand.u32 %s89, 1
          %s193 = smul.addr %s192, 76
          %s194 = scalar_lea.vmem [#allocation7], %s193
          %s196 = ssub.s32 1216, 1216
          %197 = vsyncadd %s191, %s196
          %s198 = smul.addr %s23, 19
          %s199 = sadd.s32 %s24, %s198
          %s200 = smul.addr %s199, 64
          %s201 = scalar_lea.hbm %s2, %s200
          %s202 = sshll.u32 %s194, 4
          %s203 = int_to_ptr.vmem [resolvable:$true] %s202
          %208 = dma.hbm_to_vmem [thread:$0]  %s201, 1216, %s203, %s191, 64, 64, 4
        $region28: #{rad_perceptual_similarity.1} parent=19 // pred_fallthru
          _
      $region20: #{rad_perceptual_similarity.1} parent=5 // pred_fallthru
        _
      %p209 = scmp.le.s32.totalorder 1, %s16
      %p210 = scmp.lt.s32.totalorder %s16, 3
      %p211 = pnand %p209, %p210
      %p212 = pneg %p211
      // Predicated region
      $region29: #{rad_perceptual_similarity.1} parent=5 // pred_check
        _
      $region30: #{rad_perceptual_similarity.1} parent=5 // pred_check_branch
        %214 = sbr.rel (%p211) target = $region32
      $region31: #{rad_perceptual_similarity.1} parent=5 // pred_region
        %s215 = ssub.s32 %s16, 1
        // Predicated region
        $region33: #{rad_perceptual_similarity.1} parent=31 // pred_check
          %p216 = pneg %p49
        $region34: #{rad_perceptual_similarity.1} parent=31 // pred_check_branch
          %218 = sbr.rel (%p216) target = $region36
        $region35: #{rad_perceptual_similarity.1} parent=31 // pred_region
          %219 = dma.done [#allocation3], 512
        $region36: #{rad_perceptual_similarity.1} parent=31 // pred_fallthru
          _
        %s220 = sand.u32 %s21, 1
        %s221 = scalar_lea.sflag [#allocation6], %s220
        %s222 = sand.u32 %s64, 1
        %s223 = smul.addr %s222, 76
        %s224 = scalar_lea.vmem [#allocation5], %s223
        // Predicated region
        $region37: #{rad_perceptual_similarity.1} parent=31 // pred_check
          %p225 = pneg %p77
        $region38: #{rad_perceptual_similarity.1} parent=31 // pred_check_branch
          %227 = sbr.rel (%p225) target = $region40
        $region39: #{rad_perceptual_similarity.1} parent=31 // pred_region
          %228 = dma.done %s221, 1216
        $region40: #{rad_perceptual_similarity.1} parent=31 // pred_fallthru
          _
        %s229 = sand.u32 %s21, 1
        %s230 = scalar_lea.sflag [#allocation6], %s229
        %s231 = sand.u32 %s92, 1
        %s232 = smul.addr %s231, 76
        %s233 = scalar_lea.vmem [#allocation7], %s232
        // Predicated region
        $region41: #{rad_perceptual_similarity.1} parent=31 // pred_check
          %p234 = pneg %p105
        $region42: #{rad_perceptual_similarity.1} parent=31 // pred_check_branch
          %236 = sbr.rel (%p234) target = $region44
        $region43: #{rad_perceptual_similarity.1} parent=31 // pred_region
          %237 = dma.done %s230, 1216
        $region44: #{rad_perceptual_similarity.1} parent=31 // pred_fallthru
          _
        %p238 = pneg %p49
        %p239 = pneg %p46
        %s240 = sand.u32 %s21, 1
        %s241 = scalar_lea.sflag [#allocation6], %s240
        %s242 = sand.u32 %s64, 1
        %s243 = smul.addr %s242, 76
        %s244 = scalar_lea.vmem [#allocation5], %s243
        %p245 = pneg %p77
        %p246 = pneg %p74
        %s247 = sand.u32 %s21, 1
        %s248 = scalar_lea.sflag [#allocation6], %s247
        %s249 = sand.u32 %s92, 1
        %s250 = smul.addr %s249, 76
        %s251 = scalar_lea.vmem [#allocation7], %s250
        %p252 = pneg %p105
        %p253 = pneg %p102
        %p254 = pneg %p133
        %p255 = pneg %p130
        %s256 = sand.u32 %s120, 1
        %s257 = scalar_lea.sflag [#allocation4], %s256
        %s258 = sand.u32 %s120, 1
        %s259 = scalar_lea.vmem [#allocation8], %s258
        %s260 = sadd.s32 %s25, %s26
        %v262 = vld [vmem:[#allocation2] sm:$0xff]
        %v263 = vld [vmem:[#allocation2 + $0x8] sm:$0xff]
        %v264 = vld [vmem:[#allocation2 + $0x10] sm:$0xff]
        %v265 = vld [vmem:[#allocation2 + $0x18] sm:$0xff]
        %v266 = vld [vmem:[%s224] sm:$0xf]
        %v267 = vld [vmem:[%s224 + $0x4] sm:$0xf]
        %v268 = vld [vmem:[%s224 + $0x8] sm:$0xf]
        %v269 = vld [vmem:[%s224 + $0xc] sm:$0xf]
        %v270 = vld [vmem:[%s224 + $0x10] sm:$0xf]
        %v271 = vld [vmem:[%s224 + $0x14] sm:$0xf]
        %v272 = vld [vmem:[%s224 + $0x18] sm:$0xf]
        %v273 = vld [vmem:[%s224 + $0x1c] sm:$0xf]
        %v274 = vld [vmem:[%s224 + $0x20] sm:$0xf]
        %v275 = vld [vmem:[%s224 + $0x24] sm:$0xf]
        %v276 = vld [vmem:[%s224 + $0x28] sm:$0xf]
        %v277 = vld [vmem:[%s224 + $0x2c] sm:$0xf]
        %v278 = vld [vmem:[%s224 + $0x30] sm:$0xf]
        %v279 = vld [vmem:[%s224 + $0x34] sm:$0xf]
        %v280 = vld [vmem:[%s224 + $0x38] sm:$0xf]
        %v281 = vld [vmem:[%s224 + $0x3c] sm:$0xf]
        %v282 = vld [vmem:[%s224 + $0x40] sm:$0xf]
        %v283 = vld [vmem:[%s224 + $0x44] sm:$0xf]
        %v284 = vld [vmem:[%s224 + $0x48] sm:$0x3]
        %v289 = vunpack.c.l.b16 %v262
        %v290 = vunpack.c.h.b16 %v262
        %v291 = vunpack.c.l.b16 %v263
        %v292 = vunpack.c.h.b16 %v263
        %v293 = vunpack.c.l.b16 %v264
        %v294 = vunpack.c.h.b16 %v264
        %v295 = vunpack.c.l.b16 %v265
        %v296 = vunpack.c.h.b16 %v265
        %v297 = vpack.c.b16 %v291, %v289
        %v298 = vpack.c.b16 %v292, %v290
        %v299 = vpack.c.b16 %v295, %v293
        %v300 = vpack.c.b16 %v296, %v294
        %v322 = vunpack.c.l.b16 %v266
        %v323 = vunpack.c.l.b16 %v267
        %v324 = vunpack.c.l.b16 %v268
        %v325 = vunpack.c.l.b16 %v269
        %v326 = vunpack.c.l.b16 %v270
        %v327 = vunpack.c.l.b16 %v271
        %v328 = vunpack.c.l.b16 %v272
        %v329 = vunpack.c.l.b16 %v273
        %v330 = vunpack.c.l.b16 %v274
        %v331 = vunpack.c.l.b16 %v275
        %v332 = vunpack.c.l.b16 %v276
        %v333 = vunpack.c.l.b16 %v277
        %v334 = vunpack.c.l.b16 %v278
        %v335 = vunpack.c.l.b16 %v279
        %v336 = vunpack.c.l.b16 %v280
        %v337 = vunpack.c.l.b16 %v281
        %v338 = vunpack.c.l.b16 %v282
        %v339 = vunpack.c.l.b16 %v283
        %v340 = vunpack.c.l.b16 %v284
        %v341 = vpack.c.b16 %v323, %v322
        %v342 = vpack.c.b16 %v325, %v324
        %v343 = vpack.c.b16 %v327, %v326
        %v344 = vpack.c.b16 %v329, %v328
        %v345 = vpack.c.b16 %v331, %v330
        %v346 = vpack.c.b16 %v333, %v332
        %v347 = vpack.c.b16 %v335, %v334
        %v348 = vpack.c.b16 %v337, %v336
        %v349 = vpack.c.b16 %v339, %v338
        %v350 = vpack.c.b16 %v340, %v340
        %vm360 = vcmask 154624
        %v362 = vsel %vm360, %v298, 0
        %v365 = vsel %vm360, %v300, 0
        %vm367 = vcmask 1040384
        %vm368 = vcmask 1041408
        %v369 = vsel %vm367, 4294967295, 65535
        %v370 = vsel %vm368, %v369, 0
        %v372 = vand.u32 %v350, %v370
        %374 = vmatprep.subr.bf16.mxu0 0
        %375 = vmatpush1.bf16.msra.mxu0 %v341
        %376 = vmatprep.subr.bf16.mxu0 0
        %377 = vmatpush1.bf16.msra.mxu0 %v342
        %378 = vmatprep.subr.bf16.mxu0 0
        %379 = vmatpush1.bf16.msra.mxu0 %v343
        %380 = vmatprep.subr.bf16.mxu0 0
        %381 = vmatpush1.bf16.msra.mxu0 %v344
        %382 = vmatprep.subr.bf16.mxu0 0
        %383 = vmatpush1.bf16.msra.mxu0 %v345
        %384 = vmatprep.subr.bf16.mxu0 0
        %385 = vmatpush1.bf16.msra.mxu0 %v346
        %386 = vmatprep.subr.bf16.mxu0 0
        %387 = vmatpush1.bf16.msra.mxu0 %v347
        %388 = vmatprep.subr.bf16.mxu0 0
        %389 = vmatpush1.bf16.msra.mxu0 %v348
        %390 = vmatprep.subr.bf16.mxu0 0
        %391 = vmatpush1.bf16.msra.mxu0 %v349
        %392 = vmatprep.subr.bf16.mxu0 0
        %393 = vmatpush1.bf16.msra.mxu0 %v372
        %394 = vmatprep.subr.bf16.mxu0 0
        %395 = vmatpush1.bf16.msra.mxu0 0
        %396 = vmatprep.subr.bf16.mxu0 0
        %397 = vmatpush1.bf16.msra.mxu0 0
        %398 = vmatprep.subr.bf16.mxu0 0
        %399 = vmatpush1.bf16.msra.mxu0 0
        %400 = vmatprep.subr.bf16.mxu0 0
        %401 = vmatpush1.bf16.msra.mxu0 0
        %402 = vmatprep.subr.bf16.mxu0 0
        %403 = vmatpush1.bf16.msra.mxu0 0
        %404 = vmatprep.subr.bf16.mxu0 0
        %405 = vmatpush1.bf16.msra.mxu0 0
        %406 = vmatprep.mubr.bf16.mxu0 %v362
        %407 = vmatmul.mubr.bf16.gmra.mrb[0].mxu0 %v297
        %v408 = vpop.f32.mrb[0].mxu0
        %v409 = vadd.f32 0.0, %v408
        %v410 = vpop.f32.mrb[0].mxu0
        %v411 = vpop.f32.mrb[0].mxu0
        %v412 = vadd.f32 0.0, %v411
        %v413 = vpop.f32.mrb[0].mxu0
        %414 = vmatprep.mubr.bf16.mxu0 %v365
        %415 = vmatmul.mubr.bf16.gmra.mrb[0].mxu0 %v299
        %v416 = vpop.f32.mrb[0].mxu0
        %v417 = vadd.f32 0.0, %v416
        %v418 = vpop.f32.mrb[0].mxu0
        %v419 = vpop.f32.mrb[0].mxu0
        %v420 = vadd.f32 0.0, %v419
        %v421 = vpop.f32.mrb[0].mxu0
        %422 = vdwg.mxu0
        %v423 = vmax.f32 %v409, 0.0
        %v424 = vmax.f32 %v412, 0.0
        %v425 = vmax.f32 %v417, 0.0
        %v426 = vmax.f32 %v420, 0.0
        %v427 = vld [vmem:[%s233] sm:$0xf]
        %v428 = vld [vmem:[%s233 + $0x4] sm:$0xf]
        %v429 = vld [vmem:[%s233 + $0x8] sm:$0xf]
        %v430 = vld [vmem:[%s233 + $0xc] sm:$0xf]
        %v431 = vld [vmem:[%s233 + $0x10] sm:$0xf]
        %v432 = vld [vmem:[%s233 + $0x14] sm:$0xf]
        %v433 = vld [vmem:[%s233 + $0x18] sm:$0xf]
        %v434 = vld [vmem:[%s233 + $0x1c] sm:$0xf]
        %v435 = vld [vmem:[%s233 + $0x20] sm:$0xf]
        %v436 = vld [vmem:[%s233 + $0x24] sm:$0xf]
        %v437 = vld [vmem:[%s233 + $0x28] sm:$0xf]
        %v438 = vld [vmem:[%s233 + $0x2c] sm:$0xf]
        %v439 = vld [vmem:[%s233 + $0x30] sm:$0xf]
        %v440 = vld [vmem:[%s233 + $0x34] sm:$0xf]
        %v441 = vld [vmem:[%s233 + $0x38] sm:$0xf]
        %v442 = vld [vmem:[%s233 + $0x3c] sm:$0xf]
        %v443 = vld [vmem:[%s233 + $0x40] sm:$0xf]
        %v444 = vld [vmem:[%s233 + $0x44] sm:$0xf]
        %v445 = vld [vmem:[%s233 + $0x48] sm:$0x3]
        %v465 = vunpack.c.l.b16 %v427
        %v466 = vunpack.c.l.b16 %v428
        %v467 = vunpack.c.l.b16 %v429
        %v468 = vunpack.c.l.b16 %v430
        %v469 = vunpack.c.l.b16 %v431
        %v470 = vunpack.c.l.b16 %v432
        %v471 = vunpack.c.l.b16 %v433
        %v472 = vunpack.c.l.b16 %v434
        %v473 = vunpack.c.l.b16 %v435
        %v474 = vunpack.c.l.b16 %v436
        %v475 = vunpack.c.l.b16 %v437
        %v476 = vunpack.c.l.b16 %v438
        %v477 = vunpack.c.l.b16 %v439
        %v478 = vunpack.c.l.b16 %v440
        %v479 = vunpack.c.l.b16 %v441
        %v480 = vunpack.c.l.b16 %v442
        %v481 = vunpack.c.l.b16 %v443
        %v482 = vunpack.c.l.b16 %v444
        %v483 = vunpack.c.l.b16 %v445
        %v484 = vpack.c.b16 %v466, %v465
        %v485 = vpack.c.b16 %v468, %v467
        %v486 = vpack.c.b16 %v470, %v469
        %v487 = vpack.c.b16 %v472, %v471
        %v488 = vpack.c.b16 %v474, %v473
        %v489 = vpack.c.b16 %v476, %v475
        %v490 = vpack.c.b16 %v478, %v477
        %v491 = vpack.c.b16 %v480, %v479
        %v492 = vpack.c.b16 %v482, %v481
        %v493 = vpack.c.b16 %v483, %v483
        %v504 = vand.u32 %v493, %v370
        %506 = vmatprep.subr.bf16.mxu0 0
        %507 = vmatpush1.bf16.msra.mxu0 %v484
        %508 = vmatprep.subr.bf16.mxu0 0
        %509 = vmatpush1.bf16.msra.mxu0 %v485
        %510 = vmatprep.subr.bf16.mxu0 0
        %511 = vmatpush1.bf16.msra.mxu0 %v486
        %512 = vmatprep.subr.bf16.mxu0 0
        %513 = vmatpush1.bf16.msra.mxu0 %v487
        %514 = vmatprep.subr.bf16.mxu0 0
        %515 = vmatpush1.bf16.msra.mxu0 %v488
        %516 = vmatprep.subr.bf16.mxu0 0
        %517 = vmatpush1.bf16.msra.mxu0 %v489
        %518 = vmatprep.subr.bf16.mxu0 0
        %519 = vmatpush1.bf16.msra.mxu0 %v490
        %520 = vmatprep.subr.bf16.mxu0 0
        %521 = vmatpush1.bf16.msra.mxu0 %v491
        %522 = vmatprep.subr.bf16.mxu0 0
        %523 = vmatpush1.bf16.msra.mxu0 %v492
        %524 = vmatprep.subr.bf16.mxu0 0
        %525 = vmatpush1.bf16.msra.mxu0 %v504
        %526 = vmatprep.subr.bf16.mxu0 0
        %527 = vmatpush1.bf16.msra.mxu0 0
        %528 = vmatprep.subr.bf16.mxu0 0
        %529 = vmatpush1.bf16.msra.mxu0 0
        %530 = vmatprep.subr.bf16.mxu0 0
        %531 = vmatpush1.bf16.msra.mxu0 0
        %532 = vmatprep.subr.bf16.mxu0 0
        %533 = vmatpush1.bf16.msra.mxu0 0
        %534 = vmatprep.subr.bf16.mxu0 0
        %535 = vmatpush1.bf16.msra.mxu0 0
        %536 = vmatprep.subr.bf16.mxu0 0
        %537 = vmatpush1.bf16.msra.mxu0 0
        %538 = vmatprep.mubr.bf16.mxu0 %v362
        %539 = vmatmul.mubr.bf16.gmra.mrb[0].mxu0 %v297
        %v540 = vpop.f32.mrb[0].mxu0
        %v541 = vadd.f32 0.0, %v540
        %v542 = vpop.f32.mrb[0].mxu0
        %v543 = vpop.f32.mrb[0].mxu0
        %v544 = vadd.f32 0.0, %v543
        %v545 = vpop.f32.mrb[0].mxu0
        %546 = vmatprep.mubr.bf16.mxu0 %v365
        %547 = vmatmul.mubr.bf16.gmra.mrb[0].mxu0 %v299
        %v548 = vpop.f32.mrb[0].mxu0
        %v549 = vadd.f32 0.0, %v548
        %v550 = vpop.f32.mrb[0].mxu0
        %v551 = vpop.f32.mrb[0].mxu0
        %v552 = vadd.f32 0.0, %v551
        %v553 = vpop.f32.mrb[0].mxu0
        %554 = vdwg.mxu0
        %v555 = vmax.f32 %v541, 0.0
        %v556 = vmax.f32 %v544, 0.0
        %v557 = vmax.f32 %v549, 0.0
        %v558 = vmax.f32 %v552, 0.0
        %v559 = vmul.f32 %v423, %v423
        %v560 = vmul.f32 %v424, %v424
        %v561 = vmul.f32 %v425, %v425
        %v562 = vmul.f32 %v426, %v426
        %vm563 = vcmask 523264
        %v564 = vsel %vm563, %v559, 0.0
        %v565 = vsel %vm563, %v560, 0.0
        %v566 = vadd.f32 %v564, %v565
        %v567 = vsel %vm563, %v561, 0.0
        %v568 = vadd.f32 %v566, %v567
        %v569 = vsel %vm563, %v562, 0.0
        %v570 = vadd.f32 %v568, %v569
        %v571 = vrot.slane %v570, 4
        %v572 = vadd.f32 %v570, %v571
        %v573 = vrot.slane %v572, 2
        %v574 = vadd.f32 %v572, %v573
        %v575 = vrot.slane %v574, 1
        %v576 = vadd.f32 %v574, %v575
        %v577 = vadd.f32 %v576, 1e-20
        %v578 = vrsqrt.pop %v577
        %v579 = vmul.f32 %v423, %v578
        %v580 = vmul.f32 %v424, %v578
        %v581 = vmul.f32 %v425, %v578
        %v582 = vmul.f32 %v426, %v578
        %v583 = vmul.f32 %v555, %v555
        %v584 = vmul.f32 %v556, %v556
        %v585 = vmul.f32 %v557, %v557
        %v586 = vmul.f32 %v558, %v558
        %v587 = vsel %vm563, %v583, 0.0
        %v588 = vsel %vm563, %v584, 0.0
        %v589 = vadd.f32 %v587, %v588
        %v590 = vsel %vm563, %v585, 0.0
        %v591 = vadd.f32 %v589, %v590
        %v592 = vsel %vm563, %v586, 0.0
        %v593 = vadd.f32 %v591, %v592
        %v594 = vrot.slane %v593, 4
        %v595 = vadd.f32 %v593, %v594
        %v596 = vrot.slane %v595, 2
        %v597 = vadd.f32 %v595, %v596
        %v598 = vrot.slane %v597, 1
        %v599 = vadd.f32 %v597, %v598
        %v600 = vadd.f32 %v599, 1e-20
        %v601 = vrsqrt.pop %v600
        %v602 = vmul.f32 %v555, %v601
        %v603 = vmul.f32 %v556, %v601
        %v604 = vmul.f32 %v557, %v601
        %v605 = vmul.f32 %v558, %v601
        %v606 = vsub.f32 %v579, %v602
        %v607 = vsub.f32 %v580, %v603
        %v608 = vsub.f32 %v581, %v604
        %v609 = vsub.f32 %v582, %v605
        %v610 = vmul.f32 %v606, %v606
        %v611 = vmul.f32 %v607, %v607
        %v612 = vmul.f32 %v608, %v608
        %v613 = vmul.f32 %v609, %v609
        %v614 = vsel %vm563, %v610, 0.0
        %v615 = vsel %vm563, %v611, 0.0
        %v616 = vadd.f32 %v614, %v615
        %v617 = vsel %vm563, %v612, 0.0
        %v618 = vadd.f32 %v616, %v617
        %v619 = vsel %vm563, %v613, 0.0
        %v620 = vadd.f32 %v618, %v619
        %621 = vadd.xlane.f32.xlu0 %v620
        %v622 = vpop.xlane.xlu0 %621
        %v623 = vrot.slane %v622, 4
        %v624 = vadd.f32 %v622, %v623
        %v625 = vrot.slane %v624, 2
        %v626 = vadd.f32 %v624, %v625
        %v627 = vrot.slane %v626, 1
        %v628 = vadd.f32 %v626, %v627
        %s629 = vtos %v628
        %v630 = vstv %s629
        %v631 = vadd.f32 %v630, 0.0
        %vm632 = vcmask 0
        %633 = vst.msk [vmem:[%s259] sm:$0x1] %vm632, %v631
        %s634 = sand.u32 %s120, 1
        %s635 = scalar_lea.sflag [#allocation4], %s634
        %s636 = sand.u32 %s120, 1
        %s637 = scalar_lea.vmem [#allocation8], %s636
        // Predicated region
        $region45: #{rad_perceptual_similarity.1} parent=31 // pred_check
          %p638 = pneg %p130
        $region46: #{rad_perceptual_similarity.1} parent=31 // pred_check_branch
          %640 = sbr.rel (%p638) target = $region48
        $region47: #{rad_perceptual_similarity.1} parent=31 // pred_region
          %s641 = sadd.s32 %s25, %s26
          %s643 = ssub.s32 16, 16
          %644 = vsyncadd %s635, %s643
          %s645 = smul.addr %s641, 16
          %s646 = scalar_lea.hbm %s3, %s645
          %s648 = sshll.u32 %s637, 4
          %s649 = int_to_ptr.vmem [resolvable:$true] %s648
          %651 = dma.vmem_to_hbm [thread:$0]  %s649, 16, %s646, %s635
        $region48: #{rad_perceptual_similarity.1} parent=31 // pred_fallthru
          _
      $region32: #{rad_perceptual_similarity.1} parent=5 // pred_fallthru
        _
      %p652 = scmp.le.s32.totalorder 2, %s16
      // Predicated region
      $region49: #{rad_perceptual_similarity.1} parent=5 // pred_check
        %p653 = pneg %p652
      $region50: #{rad_perceptual_similarity.1} parent=5 // pred_check_branch
        %655 = sbr.rel (%p653) target = $region52
      $region51: #{rad_perceptual_similarity.1} parent=5 // pred_region
        %s656 = ssub.s32 %s16, 2
        // Predicated region
        $region53: #{rad_perceptual_similarity.1} parent=51 // pred_check
          %p657 = pneg %p136
        $region54: #{rad_perceptual_similarity.1} parent=51 // pred_check_branch
          %659 = sbr.rel (%p657) target = $region56
        $region55: #{rad_perceptual_similarity.1} parent=51 // pred_region
          %s660 = sand.u32 %s121, 1
          %s661 = scalar_lea.sflag [#allocation4], %s660
          %s662 = sand.u32 %s121, 1
          %s663 = scalar_lea.vmem [#allocation8], %s662
          %664 = dma.done %s661, 16
        $region56: #{rad_perceptual_similarity.1} parent=51 // pred_fallthru
          _
      $region52: #{rad_perceptual_similarity.1} parent=5 // pred_fallthru
        _
    $region6: #{rad_perceptual_similarity.1} parent=1 // loop_footer
      %s20 = sadd.s32 1, %s16
    $region7: #{rad_perceptual_similarity.1} parent=1 // loop_footer_branch
      %15 = sbr.rel target = $region3
    $region8: #{rad_perceptual_similarity.1} parent=1 // loop_exit
      _
    %665 = vsyncpa [#allocation3], 1
    %s666 = scalar_lea.sflag [#allocation3], 1
    %667 = vsyncpa %s666, 1
    %668 = vsyncpa [#allocation6], 1
    %s669 = scalar_lea.sflag [#allocation6], 1
    %670 = vsyncpa %s669, 1
    %671 = vsyncpa [#allocation4], 1
    %s672 = scalar_lea.sflag [#allocation4], 1
    %673 = vsyncpa %s672, 1

</llo_original>
